<compile_context>
chip_gen: v5e
topology: v5e:2x2
jax: 0.10.0
libtpu: 0.0.40
codegen_flags: <defaults>
</compile_context>

<pallas_src>
from typing import NamedTuple, Optional

import jax
import jax.numpy as jnp
from jax import lax
from jax.experimental import pallas as pl
from jax.experimental.pallas import tpu as pltpu


class ValueStep(NamedTuple):
    value: jax.Array


# --------------------------------- kernel ----------------------------------


def _critic_head_kernel(x_ref, w_ref, b_ref, o_ref):
    """One batch tile: o[0, j] = sum_f w[0, f] * x[j, f] + b.

    x_ref: (TM, F)  VMEM tile (last grid step may contain garbage tail rows;
                    each output lane depends only on its own input row, so they
                    are harmless and sliced off in the wrapper).
    w_ref: (1, F)   VMEM, grid-resident (index_map always (0, 0)).
    b_ref: (1, 1)   SMEM scalar bias.
    o_ref: (1, TM)  lane-dense output row for this tile.
    """
    # (1, F) x (TM, F) contracting F with F -> (1, TM) on the MXU; the result is
    # already laid out along lanes for an unmasked, contiguous store and the
    # VPU/XLU stay free.  f32 accumulation regardless of input dtype.
    acc = lax.dot_general(
        w_ref[...], x_ref[...],
        dimension_numbers=(((1,), (1,)), ((), ())),
        preferred_element_type=jnp.float32,
    )
    o_ref[...] = (acc + b_ref[0, 0]).astype(o_ref.dtype)


# ----------------------------- tiling heuristics ----------------------------


_MIN_TILE_BYTES = 1 << 20   # ~85% of HBM roofline is already reached at ~1 MiB tiles
_MAX_TILE_BYTES = 8 << 20


def _sublane_align(dtype) -> int:
    """Sublane packing multiple: 8 (f32), 16 (bf16), 32 (int8/fp8)."""
    return max(8, 32 // jnp.dtype(dtype).itemsize)


def _x_tile_target_bytes() -> int:
    """Per-buffer x-tile byte target, sized per TPU generation.

    cap // 16 keeps the double-buffered x footprint <= cap / 8, which is safe
    per TensorCore on v7x (64 MiB/TC, both cores active under the megacore
    split) while letting v5e/v6e (128 MiB VMEM) run larger tiles / fewer grid
    steps.
    """
    try:
        cap = pltpu.get_tpu_info().vmem_capacity_bytes
    except Exception:
        cap = 64 << 20  # conservative v7x per-TC fallback
    return max(_MIN_TILE_BYTES, min(_MAX_TILE_BYTES, cap // 16))


def _choose_block_rows(batch: int, feature_dim: int, dtype) -> int:
    itemsize = jnp.dtype(dtype).itemsize
    align = _sublane_align(dtype)
    tm = max(1, _x_tile_target_bytes() // (feature_dim * itemsize))
    tm = min(tm, pl.cdiv(batch, align) * align)   # don't over-tile tiny batches
    return max(align, (tm // align) * align)


def _vmem_limit_bytes(tm: int, feature_dim: int, itemsize: int) -> Optional[int]:
    """Raise the scoped-VMEM limit only if the chosen tiles need it."""
    x_bytes = 2 * tm * feature_dim * itemsize                # double-buffered x tiles
    out_bytes = 2 * pl.cdiv(tm, 128) * (8 * 128 * 4)         # (1, TM) native-tile padded
    w_bytes = 8 * pl.cdiv(feature_dim, 128) * 128 * 4        # resident (1, F), padded
    needed = x_bytes + out_bytes + w_bytes
    if needed <= 14 * (1 << 20):   # fits the smallest scoped default (v5e: 16 MiB)
        return None
    return min(48 * (1 << 20), needed + (8 << 20))           # < v7x 64 MiB/TC ceiling


# --------------------------------- wrapper ---------------------------------


def critic_head_forward(x: jax.Array, weight: jax.Array, bias: jax.Array,
                        *, block_rows: Optional[int] = None) -> ValueStep:
    """Pallas equivalent of CriticHead.forward.

    Args:
      x:      (B, F) features.
      weight: (1, F) nn.Linear weight (PyTorch layout, used as-is, no transpose).
      bias:   (1,) nn.Linear bias.
      block_rows: optional batch-tile override (testing / tuning).

    Returns:
      ValueStep(value=(B,)) matching `critic_layer(x).squeeze(-1)`.
    """
    B, F = x.shape
    assert weight.shape == (1, F) and bias.shape == (1,)

    align = _sublane_align(x.dtype)
    if block_rows is None:
        TM = _choose_block_rows(B, F, x.dtype)
    else:
        TM = max(align, (block_rows // align) * align)
    num_tiles = pl.cdiv(B, TM)

    b_smem = bias.reshape(1, 1).astype(jnp.float32)
    itemsize = jnp.dtype(x.dtype).itemsize

    # TODO(synk): for the module's tiny real workload (B=2, F=32) this
    # standalone call is launch-overhead dominated and F < 128 wastes vreg
    # lanes; in production fuse the head into the trunk matmul epilogue.
    out = pl.pallas_call(
        _critic_head_kernel,
        out_shape=jax.ShapeDtypeStruct((num_tiles, TM), x.dtype),
        grid_spec=pltpu.PrefetchScalarGridSpec(
            num_scalar_prefetch=0,
            grid=(num_tiles,),
            in_specs=[
                # x: batch-tiled, double-buffered by BlockSpec; ragged tail is
                # handled by Pallas (no wrapper pad).  If profiling shows
                # exposed DMA on long grids, sweep pipeline_mode=pl.Buffered(3).
                pl.BlockSpec((TM, F), lambda i: (i, 0)),
                pl.BlockSpec((1, F), lambda i: (0, 0)),              # weight: VMEM-resident
                pl.BlockSpec(memory_space=pltpu.MemorySpace.SMEM),   # bias scalar
            ],
            out_specs=pl.BlockSpec((1, TM), lambda i: (i, 0)),       # lane-dense row
        ),
        compiler_params=pltpu.CompilerParams(
            dimension_semantics=("parallel",),        # megacore split on v7x
            vmem_limit_bytes=_vmem_limit_bytes(TM, F, itemsize),
        ),
        cost_estimate=pl.CostEstimate(
            flops=2 * B * F,
            transcendentals=0,
            bytes_accessed=itemsize * (B * F + F + B),
        ),
    )(x, weight, b_smem)

    # (num_tiles, TM) -> (B,): drop the garbage tail of the last partial tile
    # and apply the module's squeeze(-1).
    return ValueStep(value=out.reshape(num_tiles * TM)[:B])


def init_critic_head_params(key: jax.Array, feature_dim: int):
    """Deterministic init matching nn.init.uniform_(-0.003, 0.003)."""
    kw, kb = jax.random.split(key)
    weight = jax.random.uniform(kw, (1, feature_dim), jnp.float32, -0.003, 0.003)
    bias = jax.random.uniform(kb, (1,), jnp.float32, -0.003, 0.003)
    return weight, bias


if __name__ == "__main__":
    key = jax.random.PRNGKey(0)
    k_x, k_p, k_x2, k_p2 = jax.random.split(key, 4)

    # Typical module usage: small batch, small feature dim (B=2, F=32).
    batch, feature_dim = 2, 32
    x = jax.random.normal(k_x, (batch, feature_dim), jnp.float32)
    weight, bias = init_critic_head_params(k_p, feature_dim)

    step = critic_head_forward(x, weight, bias)
    value = jax.block_until_ready(step.value)
    ref = (x @ weight.T + bias)[:, 0]
    assert value.shape == (batch,)
    assert jnp.allclose(value, ref, atol=1e-5, rtol=1e-5)

    # Multi-tile grid + ragged tail (forced small tile so several steps run,
    # last block partial with no wrapper-side padding).
    batch2, feature_dim2 = 300, 64
    x2 = jax.random.normal(k_x2, (batch2, feature_dim2), jnp.float32)
    weight2, bias2 = init_critic_head_params(k_p2, feature_dim2)

    step2 = critic_head_forward(x2, weight2, bias2, block_rows=128)
    value2 = jax.block_until_ready(step2.value)
    ref2 = (x2 @ weight2.T + bias2)[:, 0]
    assert value2.shape == (batch2,)
    assert jnp.allclose(value2, ref2, atol=1e-4, rtol=1e-5)

    print("KERNEL_OK")
</pallas_src>

<mosaic_0001>
module attributes {stable_mosaic.version = 11 : i64} {
  func.func @_critic_head_kernel(%arg0: i32, %arg1: memref<8x32xf32, #tpu.memory_space<vmem>>, %arg2: memref<1x32xf32, #tpu.memory_space<vmem>>, %arg3: memref<1x1xf32, #tpu.memory_space<smem>>, %arg4: memref<1x8xf32, #tpu.memory_space<vmem>>) attributes {dimension_semantics = [#tpu.dimension_semantics<parallel>], iteration_bounds = array<i64: 1>, scalar_prefetch = 0 : i64, scratch_operands = 0 : i64, tpu.core_type = #tpu.core_type<tc>, window_params = [{transform_indices = @transform_0, window_bounds = array<i64: 8, 32>}, {pipeline_mode = #tpu.pipeline_mode<synchronous>, transform_indices = @transform_1, window_bounds = array<i64: 1, 32>}, {transform_indices = @transform_2, window_bounds = array<i64: 1, 1>}, {transform_indices = @transform_3, window_bounds = array<i64: 1, 8>}]} {
    %c0 = arith.constant 0 : index
    %c0_0 = arith.constant 0 : index
    %0 = vector.load %arg2[%c0, %c0_0] : memref<1x32xf32, #tpu.memory_space<vmem>>, vector<1x32xf32>
    %c0_1 = arith.constant 0 : index
    %c0_2 = arith.constant 0 : index
    %1 = vector.load %arg1[%c0_1, %c0_2] : memref<8x32xf32, #tpu.memory_space<vmem>>, vector<8x32xf32>
    %cst = arith.constant dense<0.000000e+00> : vector<1x8xf32>
    %2 = tpu.matmul %0, %1, %cst {dimension_numbers = #tpu.dot_dimension_numbers<[1], [1], [0], [0], [0, 0, 1, 0], [], []>} : vector<1x32xf32>, vector<8x32xf32>, vector<1x8xf32> -> vector<1x8xf32>
    %c0_3 = arith.constant 0 : index
    %c0_4 = arith.constant 0 : index
    %3 = memref.load %arg3[%c0_3, %c0_4] : memref<1x1xf32, #tpu.memory_space<smem>>
    %4 = vector.broadcast %3 : f32 to vector<1x8xf32>
    %5 = arith.addf %2, %4 : vector<1x8xf32>
    %c0_5 = arith.constant 0 : index
    %c0_6 = arith.constant 0 : index
    %6 = vector.load %arg4[%c0_5, %c0_6] : memref<1x8xf32, #tpu.memory_space<vmem>>, vector<1x8xf32>
    tpu.vector_store %arg4[%c0_5, %c0_6], %5 {strides = array<i32>} : memref<1x8xf32, #tpu.memory_space<vmem>>, vector<1x8xf32>,
    return
  }
  func.func @transform_0(%arg0: i32) -> (i32, i32) {
    %c0_i32 = arith.constant 0 : i32
    %c0_i32_0 = arith.constant 0 : i32
    return %arg0, %c0_i32 : i32, i32
  }
  func.func @transform_1(%arg0: i32) -> (i32, i32) {
    %c0_i32 = arith.constant 0 : i32
    %c0_i32_0 = arith.constant 0 : i32
    %c0_i32_1 = arith.constant 0 : i32
    return %c0_i32, %c0_i32_0 : i32, i32
  }
  func.func @transform_2(%arg0: i32) -> (i32, i32) {
    %c0_i32 = arith.constant 0 : i32
    %c0_i32_0 = arith.constant 0 : i32
    %c0_i32_1 = arith.constant 0 : i32
    return %c0_i32, %c0_i32_0 : i32, i32
  }
  func.func @transform_3(%arg0: i32) -> (i32, i32) {
    %c0_i32 = arith.constant 0 : i32
    %c0_i32_0 = arith.constant 0 : i32
    return %arg0, %c0_i32 : i32, i32
  }
}

</mosaic_0001>

<llo_original>
// kernel: tpu_custom_call.1
$region0: #{tpu_custom_call.1}
  #allocation0 [shape = 'u32[]', space=smem, size = 0x4, offset = 0x4, fixed_abs, tag = 'smem constant byte address 0x4 - core index']
  #allocation1 [shape = 'u32[72,128]{1,0:T(1,128)}', space=vmem, size = 0x9000, scoped, tag = 'internal scratch']
  #allocation2 [shape = 'f32[1,1]{1,0:T(1,128)S(6)}', space=smem, size = 0x200, scoped, tag = 'scoped memory for tpu_custom_call.1']
  %s0 = inlined_call_operand.vmem [shape: f32[2,32], index: 0, kind: input, shape index: {}]
  %s1 = inlined_call_operand.hbm [shape: f32[1,32], index: 1, kind: input, shape index: {}]
  %s2 = inlined_call_operand.<no memory space> [shape: f32[1,1], index: 2, kind: input, shape index: {}]
  %s3 = inlined_call_operand.hbm [shape: f32[1,8], index: 3, kind: output, shape index: {}]
  %s4 = sld [smem:[#allocation0]]
  $region26: #{tpu_custom_call.1} parent=0
    _
  %s6 = ssub.s32 1, %s4
  %s7 = scalar_select 0, %s6, %s4
  %8 = sst [smem:[#allocation2]] %s2
  $region1: #{tpu_custom_call.1} parent=0
    #allocation3 [shape = 'u8[512]{0}', space=vmem, size = 0x400, scoped, tag = 'input window, operand 1, single buffered']
    #allocation4 [shape = 's32[1]{0}', space=sflag, size = 0x4, scoped, tag = 'scoped memory for tpu_custom_call.1']
    #allocation5 [shape = 's32[1]{0}', space=sflag, size = 0x4, scoped, tag = 'scoped memory for tpu_custom_call.1']
    #allocation6 [shape = 'u8[512]{0}', space=vmem, size = 0x400, scoped, tag = 'output window, operand 0, single buffered']
    %9 = vsyncpa [#allocation4], 0
    %10 = vsyncpa [#allocation5], 0
    // Predicated region
    $region2: #{tpu_custom_call.1} parent=1 // pred_check
      _
    $region3: #{tpu_custom_call.1} parent=1 // pred_check_branch
      %12 = sbr.rel (0) target = $region5
    $region4: #{tpu_custom_call.1} parent=1 // pred_region
      _
    $region5: #{tpu_custom_call.1} parent=1 // pred_fallthru
      _
    // Predicated region
    $region6: #{tpu_custom_call.1} parent=1 // pred_check
      _
    $region7: #{tpu_custom_call.1} parent=1 // pred_check_branch
      %14 = sbr.rel (0) target = $region9
    $region8: #{tpu_custom_call.1} parent=1 // pred_region
      %16 = vsyncadd [#allocation4], 0
      %s18 = sshll.u32 %s1, 4
      %s19 = int_to_ptr.hbm [resolvable:$true] %s18
      %s20 = sshll.u32 [#allocation3], 4
      %s21 = int_to_ptr.vmem [resolvable:$true] %s20
      %23 = dma.hbm_to_vmem [thread:$0]  %s19, 16, %s21, [#allocation4]
    $region9: #{tpu_custom_call.1} parent=1 // pred_fallthru
      _
    // Predicated region
    $region10: #{tpu_custom_call.1} parent=1 // pred_check
      _
    $region11: #{tpu_custom_call.1} parent=1 // pred_check_branch
      %25 = sbr.rel (0) target = $region13
    $region12: #{tpu_custom_call.1} parent=1 // pred_region
      _
    $region13: #{tpu_custom_call.1} parent=1 // pred_fallthru
      _
    // Predicated region
    $region14: #{tpu_custom_call.1} parent=1 // pred_check
      _
    $region15: #{tpu_custom_call.1} parent=1 // pred_check_branch
      %27 = sbr.rel (0) target = $region17
    $region16: #{tpu_custom_call.1} parent=1 // pred_region
      %29 = dma.done [#allocation4], 16
    $region17: #{tpu_custom_call.1} parent=1 // pred_fallthru
      _
    %v30 = vld [vmem:[#allocation3] sm:$0x1]
    %v31 = vld [vmem:[%s0] sm:$0xff]
    %s32 = sld [smem:[#allocation2]]
    %v33 = vstv %s32
    %vm34 = vcmask 261120
    %v36 = vsel %vm34, %v30, 0
    %v39 = vsel %vm34, %v31, 0
    %41 = vmatpush.xpose.msra.mxu0 0.0
    %42 = vmatpush.xpose.msra.mxu0 0.0
    %43 = vmatpush.xpose.msra.mxu0 0.0
    %44 = vmatpush.xpose.msra.mxu0 0.0
    %45 = vmatpush.xpose.msra.mxu0 0.0
    %46 = vmatpush.xpose.msra.mxu0 0.0
    %47 = vmatpush.xpose.msra.mxu0 0.0
    %48 = vmatpush.xpose.msra.mxu0 0.0
    %49 = vmatpush.xpose.msra.mxu0 0.0
    %50 = vmatpush.xpose.msra.mxu0 0.0
    %51 = vmatpush.xpose.msra.mxu0 0.0
    %52 = vmatpush.xpose.msra.mxu0 0.0
    %53 = vmatpush.xpose.msra.mxu0 0.0
    %54 = vmatpush.xpose.msra.mxu0 0.0
    %55 = vmatpush.xpose.msra.mxu0 0.0
    %56 = vmatpush.xpose.msra.mxu0 %v39
    %57 = vmatmul.f32.gmra.mxu0 %v36
    %v58 = vpop.f32.mrf.mxu0
    %v59 = vadd.f32 %v33, %v58
    %60 = vdwg.mxu0
    %vm61 = vcmask 57344
    %62 = vst.msk [vmem:[#allocation6] sm:$0x1] %vm61, %v59
    // Predicated region
    $region18: #{tpu_custom_call.1} parent=1 // pred_check
      _
    $region19: #{tpu_custom_call.1} parent=1 // pred_check_branch
      %64 = sbr.rel (0) target = $region21
    $region20: #{tpu_custom_call.1} parent=1 // pred_region
      %66 = vsyncadd [#allocation5], 0
      %s68 = sshll.u32 [#allocation6], 4
      %s69 = int_to_ptr.vmem [resolvable:$true] %s68
      %s70 = sshll.u32 %s3, 4
      %s71 = int_to_ptr.hbm [resolvable:$true] %s70
      %73 = dma.vmem_to_hbm [thread:$0]  %s69, 16, %s71, [#allocation5]
    $region21: #{tpu_custom_call.1} parent=1 // pred_fallthru
      _
    // Predicated region
    $region22: #{tpu_custom_call.1} parent=1 // pred_check
      _
    $region23: #{tpu_custom_call.1} parent=1 // pred_check_branch
      %75 = sbr.rel (0) target = $region25
    $region24: #{tpu_custom_call.1} parent=1 // pred_region
      %77 = dma.done [#allocation5], 16
    $region25: #{tpu_custom_call.1} parent=1 // pred_fallthru
      _
    %78 = vsyncpa [#allocation4], 1
    %79 = vsyncpa [#allocation5], 1

</llo_original>
